<compile_context>
chip_gen: v7x
topology: tpu7x:2x2x1
jax: 0.10.0
libtpu: 0.0.40
codegen_flags: <defaults>
</compile_context>

<pallas_src>
import functools
import math

import jax
import jax.numpy as jnp
from jax.experimental import pallas as pl
from jax.experimental.pallas import tpu as pltpu

_C1 = math.sqrt(2.0 / math.pi)          # sqrt(2/pi)
_C2 = 0.044715 * _C1                     # folded polynomial coefficient


def _round_up(x, m):
    return ((x + m - 1) // m) * m


def _gelu_tanh(x):
    # == 0.5*x*(1 + tanh(sqrt(2/pi)*(x + 0.044715*x^3))), fewer VALU ops.
    u = x * (_C1 + _C2 * (x * x))
    return x * (0.5 + 0.5 * jnp.tanh(u))


def _vmem_capacity_bytes():
    try:
        return int(pltpu.get_tpu_info().vmem_capacity_bytes)
    except Exception:
        return 64 << 20  # safe lower bound (v7x per-TC VMEM)


def _device_kind():
    try:
        return jax.devices()[0].device_kind.lower()
    except Exception:
        return ""


def _lane_granule():
    # v5e's 128x128 MXU is saturated at 128; v6e/v7x MXU tiles are 256x256 so pad
    # dims > 128 to multiples of 256 there.
    kind = _device_kind()
    if any(tag in kind for tag in ("v2", "v3", "v4", "v5")):
        return 128
    return 256


def _pad_dim(d, granule):
    if d <= 128:
        return 128
    return _round_up(d, granule)


def _divisor_tile(pd, cap=512):
    for t in (cap, 256, 128):
        if t <= pd and pd % t == 0:
            return t
    return pd


# --------------------------------------------------------------------------------------
# Fused kernel: all layers in one pass, weights resident in VMEM.
# --------------------------------------------------------------------------------------
def _fused_kernel(x_ref, *refs, shortcut_flags, out_pdims):
    # refs = (w1, ..., wL, b_packed, out_ref); w is [in, out] (pre-transposed).
    out_ref = refs[-1]
    b_ref = refs[-2]
    w_refs = refs[:-2]

    compute_dtype = x_ref.dtype
    x = x_ref[...]                                    # native dtype -> MXU directly
    for l, apply_shortcut in enumerate(shortcut_flags):
        pd = out_pdims[l]
        w = w_refs[l][...]                            # [in, out], native dtype
        b = b_ref[l:l + 1, :pd]                       # (1, pd) static slice
        y = jnp.dot(x, w, preferred_element_type=jnp.float32)  # f32 accumulation
        y = y + b.astype(jnp.float32)
        y = _gelu_tanh(y)                             # f32 math; tanh -> EUP
        if apply_shortcut:
            y = y + x.astype(jnp.float32)
        x = y.astype(compute_dtype)
    out_ref[...] = x.astype(out_ref.dtype)


# --------------------------------------------------------------------------------------
# Fallback kernel: one layer, (M, N, K)-tiled with an f32 accumulator.
# --------------------------------------------------------------------------------------
def _layer_kernel(*refs, has_residual):
    if has_residual:
        x_ref, w_ref, b_ref, r_ref, o_ref, acc_ref = refs
    else:
        x_ref, w_ref, b_ref, o_ref, acc_ref = refs
    k = pl.program_id(2)

    @pl.when(k == 0)
    def _():
        acc_ref[...] = jnp.zeros_like(acc_ref)

    acc_ref[...] += jnp.dot(x_ref[...], w_ref[...],
                            preferred_element_type=jnp.float32)

    @pl.when(k == pl.num_programs(2) - 1)
    def _():
        y = acc_ref[...] + b_ref[...].astype(jnp.float32)
        y = _gelu_tanh(y)
        if has_residual:
            y = y + r_ref[...].astype(jnp.float32)
        o_ref[...] = y.astype(o_ref.dtype)


def _run_fallback(xp, wts, bps, shortcut_flags, pdims, tm, vmem_cap):
    b_pad = xp.shape[0]
    dtype = xp.dtype
    itemsize = jnp.dtype(dtype).itemsize
    x = xp
    for l, sc in enumerate(shortcut_flags):
        pk, pn = pdims[l], pdims[l + 1]
        tk = _divisor_tile(pk, 512)
        tn = _divisor_tile(pn, 512)
        grid = (b_pad // tm, pn // tn, pk // tk)

        in_specs = [
            pl.BlockSpec((tm, tk), lambda i, j, k: (i, k)),
            pl.BlockSpec((tk, tn), lambda i, j, k: (k, j)),
            pl.BlockSpec((1, tn), lambda i, j, k: (0, j)),
        ]
        args = [x, wts[l], bps[l]]
        if sc:
            in_specs.append(pl.BlockSpec((tm, tn), lambda i, j, k: (i, j)))
            args.append(x)
        out_specs = pl.BlockSpec((tm, tn), lambda i, j, k: (i, j))

        demand = (2 * (tm * tk + tk * tn + tn + (tm * tn if sc else 0) + tm * tn)
                  * itemsize + 4 * tm * tn * 4)
        vmem_limit = int(min(max(2 * demand, 32 << 20), int(0.85 * vmem_cap)))

        kernel = functools.partial(_layer_kernel, has_residual=sc)
        x = pl.pallas_call(
            kernel,
            out_shape=jax.ShapeDtypeStruct((b_pad, pn), dtype),
            grid=grid,
            in_specs=in_specs,
            out_specs=out_specs,
            scratch_shapes=[pltpu.VMEM((tm, tn), jnp.float32)],
            compiler_params=pltpu.CompilerParams(
                dimension_semantics=("parallel", "parallel", "arbitrary"),
                vmem_limit_bytes=vmem_limit,
            ),
        )(*args)
    return x


# --------------------------------------------------------------------------------------
# Wrapper
# --------------------------------------------------------------------------------------
def example_deep_neural_network(x, weights, biases, use_shortcut=True,
                                force_fallback=False):
    """x: [batch, layer_sizes[0]]; weights[i]: [layer_sizes[i+1], layer_sizes[i]]
    (PyTorch layout); biases[i]: [layer_sizes[i+1]]."""
    num_layers = len(weights)
    batch, in_dim = x.shape
    dims = [int(in_dim)] + [int(w.shape[0]) for w in weights]
    granule = _lane_granule()
    pdims = [_pad_dim(d, granule) for d in dims]
    max_pd = max(pdims[1:])

    dtype = x.dtype
    itemsize = jnp.dtype(dtype).itemsize
    sub = 8 if itemsize == 4 else 16

    # Host-side layout plumbing: transpose weights to [in, out] and zero-pad.
    wts = []
    for l, w in enumerate(weights):
        wt = jnp.transpose(w).astype(dtype)
        wt = jnp.pad(wt, ((0, pdims[l] - dims[l]), (0, pdims[l + 1] - dims[l + 1])))
        wts.append(wt)

    # Shortcut decided on ORIGINAL dims (padding could alias unequal dims).
    shortcut_flags = tuple(
        bool(use_shortcut and dims[l] == dims[l + 1]) for l in range(num_layers)
    )

    vmem_cap = _vmem_capacity_bytes()
    budget = int(0.80 * vmem_cap)

    # Single-buffered (Buffered(1)) resident parameters: one copy each.
    param_bytes = (sum(int(w.size) for w in wts) + num_layers * max_pd) * itemsize

    def _act_bytes(tm):
        io = 2 * tm * (pdims[0] + pdims[-1]) * itemsize   # double-buffered x/out tiles
        tmp = 4 * tm * max(pdims) * 4                     # in-kernel f32 intermediates
        return io + tmp

    use_fused = (not force_fallback) and (param_bytes + _act_bytes(sub) <= budget)

    if not use_fused:
        # Resident-weight design does not fit (or forced): per-layer K/N-tiled kernels.
        tm_f = min(512, _round_up(batch, sub))
        b_pad = _round_up(batch, tm_f)
        xp = jnp.pad(x, ((0, b_pad - batch), (0, pdims[0] - dims[0])))
        bps = [
            jnp.pad(b.astype(dtype).reshape(1, -1),
                    ((0, 0), (0, pdims[l + 1] - dims[l + 1])))
            for l, b in enumerate(biases)
        ]
        out_p = _run_fallback(xp, wts, bps, shortcut_flags, pdims, tm_f, vmem_cap)
        return out_p[:batch, :dims[-1]]

    # Pack the biases into one (num_layers, max_pd) table -> one DMA / one buffer.
    b_rows = [
        jnp.pad(b.astype(dtype).reshape(1, -1), ((0, 0), (0, max_pd - dims[l + 1])))
        for l, b in enumerate(biases)
    ]
    b_packed = jnp.concatenate(b_rows, axis=0)

    # Adaptive batch tile: largest sublane-aligned TM that fits the VMEM budget.
    tm_cap = min(2048, _round_up(batch, sub))
    candidates = sorted(
        {tm_cap} | {t for t in (2048, 1024, 512, 256, 128, 64, 32, 16, 8)
                    if t <= tm_cap and t % sub == 0},
        reverse=True)
    tm = sub
    for cand in candidates:
        if param_bytes + _act_bytes(cand) <= budget:
            tm = cand
            break
    b_pad = _round_up(batch, tm)

    # v7x has 2 TensorCores: make sure the "parallel" batch axis has >= 2 steps.
    if "v7" in _device_kind() and b_pad // tm == 1 and batch >= 2 * sub:
        tm = _round_up((b_pad + 1) // 2, sub)
        b_pad = _round_up(batch, tm)

    xp = jnp.pad(x, ((0, b_pad - batch), (0, pdims[0] - dims[0])))

    grid = (b_pad // tm,)
    in_specs = [pl.BlockSpec((tm, pdims[0]), lambda i: (i, 0))]
    for l in range(num_layers):
        # Grid-invariant, single-buffered -> weights stay VMEM-resident, no wasted copy.
        in_specs.append(pl.BlockSpec((pdims[l], pdims[l + 1]), lambda i: (0, 0),
                                     pipeline_mode=pl.Buffered(1)))
    in_specs.append(pl.BlockSpec((num_layers, max_pd), lambda i: (0, 0),
                                 pipeline_mode=pl.Buffered(1)))
    out_specs = pl.BlockSpec((tm, pdims[-1]), lambda i: (i, 0))

    # Generation-aware VMEM cap (never exceed ~85% of physical per-core VMEM).
    vmem_limit = int(min(max(int(1.25 * (param_bytes + _act_bytes(tm))), 32 << 20),
                         int(0.85 * vmem_cap)))

    flops = 2 * sum(b_pad * pdims[l] * pdims[l + 1] for l in range(num_layers))
    transcendentals = sum(b_pad * pdims[l + 1] for l in range(num_layers))
    bytes_accessed = int(xp.size * itemsize + param_bytes
                         + b_pad * pdims[-1] * itemsize)

    kernel = functools.partial(_fused_kernel, shortcut_flags=shortcut_flags,
                               out_pdims=tuple(pdims[1:]))

    out_padded = pl.pallas_call(
        kernel,
        out_shape=jax.ShapeDtypeStruct((b_pad, pdims[-1]), dtype),
        grid=grid,
        in_specs=in_specs,
        out_specs=out_specs,
        compiler_params=pltpu.CompilerParams(
            dimension_semantics=("parallel",),
            vmem_limit_bytes=vmem_limit,
        ),
        cost_estimate=pl.CostEstimate(
            flops=flops,
            transcendentals=transcendentals,
            bytes_accessed=bytes_accessed,
        ),
    )(xp, *wts, b_packed)

    return out_padded[:batch, :dims[-1]]


def _reference(x, weights, biases, use_shortcut=True):
    # Pure-JAX reference using the original (PyTorch-form) GELU expression.
    x = x.astype(jnp.float32)
    c = math.sqrt(2.0 / math.pi)
    for w, b in zip(weights, biases):
        z = x @ w.T.astype(jnp.float32) + b.astype(jnp.float32)
        y = 0.5 * z * (1.0 + jnp.tanh(c * (z + 0.044715 * z ** 3)))
        if use_shortcut and x.shape == y.shape:
            x = x + y
        else:
            x = y
    return x


if __name__ == "__main__":
    # 6 layer sizes -> 5 Linear+GELU layers, as in the PyTorch module.
    layer_sizes = [32, 32, 32, 32, 32, 32]
    use_shortcut = True
    batch = 8

    key = jax.random.PRNGKey(0)
    keys = jax.random.split(key, 1 + 2 * 5)

    x = jax.random.normal(keys[0], (batch, layer_sizes[0]), dtype=jnp.float32)

    weights, biases = [], []
    for i in range(5):
        fan_in = layer_sizes[i]
        fan_out = layer_sizes[i + 1]
        bound = 1.0 / math.sqrt(fan_in)
        w = jax.random.uniform(
            keys[1 + 2 * i], (fan_out, fan_in), jnp.float32, -bound, bound
        )
        b = jax.random.uniform(
            keys[2 + 2 * i], (fan_out,), jnp.float32, -bound, bound
        )
        weights.append(w)
        biases.append(b)

    ref = _reference(x, weights, biases, use_shortcut)

    # Fused (resident-weight) path.
    out = example_deep_neural_network(x, weights, biases, use_shortcut)
    out = jax.block_until_ready(out)
    assert out.shape == (batch, layer_sizes[-1])
    assert jnp.allclose(out, ref, atol=1e-5, rtol=1e-5)

    # Tiled per-layer fallback path (used when the weights exceed the VMEM budget).
    out_fb = example_deep_neural_network(x, weights, biases, use_shortcut,
                                         force_fallback=True)
    out_fb = jax.block_until_ready(out_fb)
    assert out_fb.shape == (batch, layer_sizes[-1])
    assert jnp.allclose(out_fb, ref, atol=1e-5, rtol=1e-5)

    print("KERNEL_OK")
</pallas_src>

<mosaic_0001>
module attributes {stable_mosaic.version = 11 : i64} {
  func.func @_fused_kernel(%arg0: i32, %arg1: memref<8x128xf32, #tpu.memory_space<vmem>>, %arg2: memref<128x128xf32, #tpu.memory_space<vmem>>, %arg3: memref<128x128xf32, #tpu.memory_space<vmem>>, %arg4: memref<128x128xf32, #tpu.memory_space<vmem>>, %arg5: memref<128x128xf32, #tpu.memory_space<vmem>>, %arg6: memref<128x128xf32, #tpu.memory_space<vmem>>, %arg7: memref<5x128xf32, #tpu.memory_space<vmem>>, %arg8: memref<8x128xf32, #tpu.memory_space<vmem>>) attributes {dimension_semantics = [#tpu.dimension_semantics<parallel>], iteration_bounds = array<i64: 1>, scalar_prefetch = 0 : i64, scratch_operands = 0 : i64, tpu.core_type = #tpu.core_type<tc>, window_params = [{transform_indices = @transform_0, window_bounds = array<i64: 8, 128>}, {pipeline_mode = #tpu.pipeline_mode<synchronous>, transform_indices = @transform_1, window_bounds = array<i64: 128, 128>}, {pipeline_mode = #tpu.pipeline_mode<synchronous>, transform_indices = @transform_2, window_bounds = array<i64: 128, 128>}, {pipeline_mode = #tpu.pipeline_mode<synchronous>, transform_indices = @transform_3, window_bounds = array<i64: 128, 128>}, {pipeline_mode = #tpu.pipeline_mode<synchronous>, transform_indices = @transform_4, window_bounds = array<i64: 128, 128>}, {pipeline_mode = #tpu.pipeline_mode<synchronous>, transform_indices = @transform_5, window_bounds = array<i64: 128, 128>}, {pipeline_mode = #tpu.pipeline_mode<synchronous>, transform_indices = @transform_6, window_bounds = array<i64: 5, 128>}, {transform_indices = @transform_7, window_bounds = array<i64: 8, 128>}]} {
    %c0 = arith.constant 0 : index
    %c0_0 = arith.constant 0 : index
    %0 = vector.load %arg1[%c0, %c0_0] : memref<8x128xf32, #tpu.memory_space<vmem>>, vector<8x128xf32>
    %c0_1 = arith.constant 0 : index
    %c0_2 = arith.constant 0 : index
    %1 = vector.load %arg2[%c0_1, %c0_2] : memref<128x128xf32, #tpu.memory_space<vmem>>, vector<128x128xf32>
    %c0_3 = arith.constant 0 : index
    %c0_4 = arith.constant 0 : index
    %2 = vector.load %arg7[%c0_3, %c0_4] : memref<5x128xf32, #tpu.memory_space<vmem>>, vector<1x128xf32>
    %cst = arith.constant dense<0.000000e+00> : vector<8x128xf32>
    %3 = tpu.matmul %0, %1, %cst {dimension_numbers = #tpu.dot_dimension_numbers<[1], [0], [0], [1], [0, 0, 1, 1], [], []>} : vector<8x128xf32>, vector<128x128xf32>, vector<8x128xf32> -> vector<8x128xf32>
    %4 = vector.broadcast %2 : vector<1x128xf32> to vector<8x128xf32>
    %5 = arith.addf %3, %4 : vector<8x128xf32>
    %6 = arith.mulf %5, %5 : vector<8x128xf32>
    %cst_5 = arith.constant 0.0356774069 : f32
    %7 = vector.broadcast %cst_5 : f32 to vector<8x128xf32>
    %8 = arith.mulf %7, %6 : vector<8x128xf32>
    %cst_6 = arith.constant 0.797884583 : f32
    %9 = vector.broadcast %cst_6 : f32 to vector<8x128xf32>
    %10 = arith.addf %9, %8 : vector<8x128xf32>
    %11 = arith.mulf %5, %10 : vector<8x128xf32>
    %12 = math.tanh %11 : vector<8x128xf32>
    %cst_7 = arith.constant 5.000000e-01 : f32
    %13 = vector.broadcast %cst_7 : f32 to vector<8x128xf32>
    %14 = arith.mulf %13, %12 : vector<8x128xf32>
    %cst_8 = arith.constant 5.000000e-01 : f32
    %15 = vector.broadcast %cst_8 : f32 to vector<8x128xf32>
    %16 = arith.addf %15, %14 : vector<8x128xf32>
    %17 = arith.mulf %5, %16 : vector<8x128xf32>
    %18 = arith.addf %17, %0 : vector<8x128xf32>
    %c0_9 = arith.constant 0 : index
    %c0_10 = arith.constant 0 : index
    %19 = vector.load %arg3[%c0_9, %c0_10] : memref<128x128xf32, #tpu.memory_space<vmem>>, vector<128x128xf32>
    %c1 = arith.constant 1 : index
    %c0_11 = arith.constant 0 : index
    %20 = vector.load %arg7[%c1, %c0_11] : memref<5x128xf32, #tpu.memory_space<vmem>>, vector<1x128xf32>
    %cst_12 = arith.constant dense<0.000000e+00> : vector<8x128xf32>
    %21 = tpu.matmul %18, %19, %cst_12 {dimension_numbers = #tpu.dot_dimension_numbers<[1], [0], [0], [1], [0, 0, 1, 1], [], []>} : vector<8x128xf32>, vector<128x128xf32>, vector<8x128xf32> -> vector<8x128xf32>
    %22 = vector.broadcast %20 : vector<1x128xf32> to vector<8x128xf32>
    %23 = arith.addf %21, %22 : vector<8x128xf32>
    %24 = arith.mulf %23, %23 : vector<8x128xf32>
    %cst_13 = arith.constant 0.0356774069 : f32
    %25 = vector.broadcast %cst_13 : f32 to vector<8x128xf32>
    %26 = arith.mulf %25, %24 : vector<8x128xf32>
    %cst_14 = arith.constant 0.797884583 : f32
    %27 = vector.broadcast %cst_14 : f32 to vector<8x128xf32>
    %28 = arith.addf %27, %26 : vector<8x128xf32>
    %29 = arith.mulf %23, %28 : vector<8x128xf32>
    %30 = math.tanh %29 : vector<8x128xf32>
    %cst_15 = arith.constant 5.000000e-01 : f32
    %31 = vector.broadcast %cst_15 : f32 to vector<8x128xf32>
    %32 = arith.mulf %31, %30 : vector<8x128xf32>
    %cst_16 = arith.constant 5.000000e-01 : f32
    %33 = vector.broadcast %cst_16 : f32 to vector<8x128xf32>
    %34 = arith.addf %33, %32 : vector<8x128xf32>
    %35 = arith.mulf %23, %34 : vector<8x128xf32>
    %36 = arith.addf %35, %18 : vector<8x128xf32>
    %c0_17 = arith.constant 0 : index
    %c0_18 = arith.constant 0 : index
    %37 = vector.load %arg4[%c0_17, %c0_18] : memref<128x128xf32, #tpu.memory_space<vmem>>, vector<128x128xf32>
    %c2 = arith.constant 2 : index
    %c0_19 = arith.constant 0 : index
    %38 = vector.load %arg7[%c2, %c0_19] : memref<5x128xf32, #tpu.memory_space<vmem>>, vector<1x128xf32>
    %cst_20 = arith.constant dense<0.000000e+00> : vector<8x128xf32>
    %39 = tpu.matmul %36, %37, %cst_20 {dimension_numbers = #tpu.dot_dimension_numbers<[1], [0], [0], [1], [0, 0, 1, 1], [], []>} : vector<8x128xf32>, vector<128x128xf32>, vector<8x128xf32> -> vector<8x128xf32>
    %40 = vector.broadcast %38 : vector<1x128xf32> to vector<8x128xf32>
    %41 = arith.addf %39, %40 : vector<8x128xf32>
    %42 = arith.mulf %41, %41 : vector<8x128xf32>
    %cst_21 = arith.constant 0.0356774069 : f32
    %43 = vector.broadcast %cst_21 : f32 to vector<8x128xf32>
    %44 = arith.mulf %43, %42 : vector<8x128xf32>
    %cst_22 = arith.constant 0.797884583 : f32
    %45 = vector.broadcast %cst_22 : f32 to vector<8x128xf32>
    %46 = arith.addf %45, %44 : vector<8x128xf32>
    %47 = arith.mulf %41, %46 : vector<8x128xf32>
    %48 = math.tanh %47 : vector<8x128xf32>
    %cst_23 = arith.constant 5.000000e-01 : f32
    %49 = vector.broadcast %cst_23 : f32 to vector<8x128xf32>
    %50 = arith.mulf %49, %48 : vector<8x128xf32>
    %cst_24 = arith.constant 5.000000e-01 : f32
    %51 = vector.broadcast %cst_24 : f32 to vector<8x128xf32>
    %52 = arith.addf %51, %50 : vector<8x128xf32>
    %53 = arith.mulf %41, %52 : vector<8x128xf32>
    %54 = arith.addf %53, %36 : vector<8x128xf32>
    %c0_25 = arith.constant 0 : index
    %c0_26 = arith.constant 0 : index
    %55 = vector.load %arg5[%c0_25, %c0_26] : memref<128x128xf32, #tpu.memory_space<vmem>>, vector<128x128xf32>
    %c3 = arith.constant 3 : index
    %c0_27 = arith.constant 0 : index
    %56 = vector.load %arg7[%c3, %c0_27] : memref<5x128xf32, #tpu.memory_space<vmem>>, vector<1x128xf32>
    %cst_28 = arith.constant dense<0.000000e+00> : vector<8x128xf32>
    %57 = tpu.matmul %54, %55, %cst_28 {dimension_numbers = #tpu.dot_dimension_numbers<[1], [0], [0], [1], [0, 0, 1, 1], [], []>} : vector<8x128xf32>, vector<128x128xf32>, vector<8x128xf32> -> vector<8x128xf32>
    %58 = vector.broadcast %56 : vector<1x128xf32> to vector<8x128xf32>
    %59 = arith.addf %57, %58 : vector<8x128xf32>
    %60 = arith.mulf %59, %59 : vector<8x128xf32>
    %cst_29 = arith.constant 0.0356774069 : f32
    %61 = vector.broadcast %cst_29 : f32 to vector<8x128xf32>
    %62 = arith.mulf %61, %60 : vector<8x128xf32>
    %cst_30 = arith.constant 0.797884583 : f32
    %63 = vector.broadcast %cst_30 : f32 to vector<8x128xf32>
    %64 = arith.addf %63, %62 : vector<8x128xf32>
    %65 = arith.mulf %59, %64 : vector<8x128xf32>
    %66 = math.tanh %65 : vector<8x128xf32>
    %cst_31 = arith.constant 5.000000e-01 : f32
    %67 = vector.broadcast %cst_31 : f32 to vector<8x128xf32>
    %68 = arith.mulf %67, %66 : vector<8x128xf32>
    %cst_32 = arith.constant 5.000000e-01 : f32
    %69 = vector.broadcast %cst_32 : f32 to vector<8x128xf32>
    %70 = arith.addf %69, %68 : vector<8x128xf32>
    %71 = arith.mulf %59, %70 : vector<8x128xf32>
    %72 = arith.addf %71, %54 : vector<8x128xf32>
    %c0_33 = arith.constant 0 : index
    %c0_34 = arith.constant 0 : index
    %73 = vector.load %arg6[%c0_33, %c0_34] : memref<128x128xf32, #tpu.memory_space<vmem>>, vector<128x128xf32>
    %c4 = arith.constant 4 : index
    %c0_35 = arith.constant 0 : index
    %74 = vector.load %arg7[%c4, %c0_35] : memref<5x128xf32, #tpu.memory_space<vmem>>, vector<1x128xf32>
    %cst_36 = arith.constant dense<0.000000e+00> : vector<8x128xf32>
    %75 = tpu.matmul %72, %73, %cst_36 {dimension_numbers = #tpu.dot_dimension_numbers<[1], [0], [0], [1], [0, 0, 1, 1], [], []>} : vector<8x128xf32>, vector<128x128xf32>, vector<8x128xf32> -> vector<8x128xf32>
    %76 = vector.broadcast %74 : vector<1x128xf32> to vector<8x128xf32>
    %77 = arith.addf %75, %76 : vector<8x128xf32>
    %78 = arith.mulf %77, %77 : vector<8x128xf32>
    %cst_37 = arith.constant 0.0356774069 : f32
    %79 = vector.broadcast %cst_37 : f32 to vector<8x128xf32>
    %80 = arith.mulf %79, %78 : vector<8x128xf32>
    %cst_38 = arith.constant 0.797884583 : f32
    %81 = vector.broadcast %cst_38 : f32 to vector<8x128xf32>
    %82 = arith.addf %81, %80 : vector<8x128xf32>
    %83 = arith.mulf %77, %82 : vector<8x128xf32>
    %84 = math.tanh %83 : vector<8x128xf32>
    %cst_39 = arith.constant 5.000000e-01 : f32
    %85 = vector.broadcast %cst_39 : f32 to vector<8x128xf32>
    %86 = arith.mulf %85, %84 : vector<8x128xf32>
    %cst_40 = arith.constant 5.000000e-01 : f32
    %87 = vector.broadcast %cst_40 : f32 to vector<8x128xf32>
    %88 = arith.addf %87, %86 : vector<8x128xf32>
    %89 = arith.mulf %77, %88 : vector<8x128xf32>
    %90 = arith.addf %89, %72 : vector<8x128xf32>
    %c0_41 = arith.constant 0 : index
    %c0_42 = arith.constant 0 : index
    %91 = vector.load %arg8[%c0_41, %c0_42] : memref<8x128xf32, #tpu.memory_space<vmem>>, vector<8x128xf32>
    tpu.vector_store %arg8[%c0_41, %c0_42], %90 {strides = array<i32>} : memref<8x128xf32, #tpu.memory_space<vmem>>, vector<8x128xf32>,
    return
  }
  func.func @transform_0(%arg0: i32) -> (i32, i32) {
    %c0_i32 = arith.constant 0 : i32
    %c0_i32_0 = arith.constant 0 : i32
    return %arg0, %c0_i32 : i32, i32
  }
  func.func @transform_1(%arg0: i32) -> (i32, i32) {
    %c0_i32 = arith.constant 0 : i32
    %c0_i32_0 = arith.constant 0 : i32
    %c0_i32_1 = arith.constant 0 : i32
    return %c0_i32, %c0_i32_0 : i32, i32
  }
  func.func @transform_2(%arg0: i32) -> (i32, i32) {
    %c0_i32 = arith.constant 0 : i32
    %c0_i32_0 = arith.constant 0 : i32
    %c0_i32_1 = arith.constant 0 : i32
    return %c0_i32, %c0_i32_0 : i32, i32
  }
  func.func @transform_3(%arg0: i32) -> (i32, i32) {
    %c0_i32 = arith.constant 0 : i32
    %c0_i32_0 = arith.constant 0 : i32
    %c0_i32_1 = arith.constant 0 : i32
    return %c0_i32, %c0_i32_0 : i32, i32
  }
  func.func @transform_4(%arg0: i32) -> (i32, i32) {
    %c0_i32 = arith.constant 0 : i32
    %c0_i32_0 = arith.constant 0 : i32
    %c0_i32_1 = arith.constant 0 : i32
    return %c0_i32, %c0_i32_0 : i32, i32
  }
  func.func @transform_5(%arg0: i32) -> (i32, i32) {
    %c0_i32 = arith.constant 0 : i32
    %c0_i32_0 = arith.constant 0 : i32
    %c0_i32_1 = arith.constant 0 : i32
    return %c0_i32, %c0_i32_0 : i32, i32
  }
  func.func @transform_6(%arg0: i32) -> (i32, i32) {
    %c0_i32 = arith.constant 0 : i32
    %c0_i32_0 = arith.constant 0 : i32
    %c0_i32_1 = arith.constant 0 : i32
    return %c0_i32, %c0_i32_0 : i32, i32
  }
  func.func @transform_7(%arg0: i32) -> (i32, i32) {
    %c0_i32 = arith.constant 0 : i32
    %c0_i32_0 = arith.constant 0 : i32
    return %arg0, %c0_i32 : i32, i32
  }
}

</mosaic_0001>

<llo_original>
// kernel: tpu_custom_call.1
$region0: #{tpu_custom_call.1}
  #allocation0 [shape = 'u32[]', space=smem, size = 0x4, offset = 0x4, fixed_abs, tag = 'smem constant byte address 0x4 - core index']
  #allocation1 [shape = 'u32[144,128]{1,0:T(1,128)}', space=vmem, size = 0x12000, scoped, tag = 'internal scratch']
  %s0 = inlined_call_operand.hbm [shape: f32[8,128], index: 0, kind: input, shape index: {}]
  %s1 = inlined_call_operand.hbm [shape: f32[128,128], index: 1, kind: input, shape index: {}]
  %s2 = inlined_call_operand.hbm [shape: f32[128,128], index: 2, kind: input, shape index: {}]
  %s3 = inlined_call_operand.hbm [shape: f32[128,128], index: 3, kind: input, shape index: {}]
  %s4 = inlined_call_operand.hbm [shape: f32[128,128], index: 4, kind: input, shape index: {}]
  %s5 = inlined_call_operand.hbm [shape: f32[128,128], index: 5, kind: input, shape index: {}]
  %s6 = inlined_call_operand.vmem [shape: f32[5,128], index: 6, kind: input, shape index: {}]
  %s7 = inlined_call_operand.hbm [shape: f32[8,128], index: 7, kind: output, shape index: {}]
  %s8 = sld [smem:[#allocation0]]
  $region62: #{tpu_custom_call.1} parent=0
    _
  %s10 = ssub.s32 1, %s8
  %s11 = scalar_select 0, %s10, %s8
  $region1: #{tpu_custom_call.1} parent=0
    #allocation2 [shape = 'u8[4096]{0}', space=vmem, size = 0x1000, scoped, tag = 'input window, operand 0, single buffered']
    #allocation3 [shape = 's32[1]{0}', space=sflag, size = 0x4, scoped, tag = 'scoped memory for tpu_custom_call.1']
    #allocation4 [shape = 's32[1]{0}', space=sflag, size = 0x4, scoped, tag = 'scoped memory for tpu_custom_call.1']
    #allocation5 [shape = 'u8[65536]{0}', space=vmem, size = 0x10000, scoped, tag = 'input window, operand 1, single buffered']
    #allocation6 [shape = 's32[1]{0}', space=sflag, size = 0x4, scoped, tag = 'scoped memory for tpu_custom_call.1']
    #allocation7 [shape = 'u8[65536]{0}', space=vmem, size = 0x10000, scoped, tag = 'input window, operand 2, single buffered']
    #allocation8 [shape = 'u8[65536]{0}', space=vmem, size = 0x10000, scoped, tag = 'input window, operand 3, single buffered']
    #allocation9 [shape = 's32[1]{0}', space=sflag, size = 0x4, scoped, tag = 'scoped memory for tpu_custom_call.1']
    #allocation10 [shape = 'u8[65536]{0}', space=vmem, size = 0x10000, scoped, tag = 'input window, operand 4, single buffered']
    #allocation11 [shape = 'u8[65536]{0}', space=vmem, size = 0x10000, scoped, tag = 'input window, operand 5, single buffered']
    #allocation12 [shape = 's32[1]{0}', space=sflag, size = 0x4, scoped, tag = 'scoped memory for tpu_custom_call.1']
    #allocation13 [shape = 'u8[4096]{0}', space=vmem, size = 0x1000, scoped, tag = 'output window, operand 0, single buffered']
    %12 = vsyncpa [#allocation3], 0
    %13 = vsyncpa [#allocation6], 0
    %14 = vsyncpa [#allocation9], 0
    %15 = vsyncpa [#allocation12], 0
    %16 = vsyncpa [#allocation4], 0
    // Predicated region
    $region2: #{tpu_custom_call.1} parent=1 // pred_check
      _
    $region3: #{tpu_custom_call.1} parent=1 // pred_check_branch
      %18 = sbr.rel (0) target = $region5
    $region4: #{tpu_custom_call.1} parent=1 // pred_region
      %s20 = ssub.s32 128, 128
      %21 = vsyncadd [#allocation3], %s20
      %s23 = sshll.u32 [#allocation2], 4
      %s24 = int_to_ptr.vmem [resolvable:$true] %s23
      %26 = dma.hbm_to_vmem [thread:$0]  %s0, 128, %s24, [#allocation3]
    $region5: #{tpu_custom_call.1} parent=1 // pred_fallthru
      _
    // Predicated region
    $region6: #{tpu_custom_call.1} parent=1 // pred_check
      _
    $region7: #{tpu_custom_call.1} parent=1 // pred_check_branch
      %28 = sbr.rel (0) target = $region9
    $region8: #{tpu_custom_call.1} parent=1 // pred_region
      %s30 = ssub.s32 2048, 2048
      %31 = vsyncadd [#allocation6], %s30
      %s32 = sshll.u32 [#allocation5], 4
      %s33 = int_to_ptr.vmem [resolvable:$true] %s32
      %38 = dma.hbm_to_vmem [thread:$0]  %s1, 2048, %s33, [#allocation6], 128, 128, 8
    $region9: #{tpu_custom_call.1} parent=1 // pred_fallthru
      _
    // Predicated region
    $region10: #{tpu_custom_call.1} parent=1 // pred_check
      _
    $region11: #{tpu_custom_call.1} parent=1 // pred_check_branch
      %40 = sbr.rel (0) target = $region13
    $region12: #{tpu_custom_call.1} parent=1 // pred_region
      %s42 = ssub.s32 2048, 2048
      %43 = vsyncadd [#allocation6], %s42
      %s44 = sshll.u32 [#allocation7], 4
      %s45 = int_to_ptr.vmem [resolvable:$true] %s44
      %50 = dma.hbm_to_vmem [thread:$0]  %s2, 2048, %s45, [#allocation6], 128, 128, 8
    $region13: #{tpu_custom_call.1} parent=1 // pred_fallthru
      _
    // Predicated region
    $region14: #{tpu_custom_call.1} parent=1 // pred_check
      _
    $region15: #{tpu_custom_call.1} parent=1 // pred_check_branch
      %52 = sbr.rel (0) target = $region17
    $region16: #{tpu_custom_call.1} parent=1 // pred_region
      %s54 = ssub.s32 2048, 2048
      %55 = vsyncadd [#allocation9], %s54
      %s56 = sshll.u32 [#allocation8], 4
      %s57 = int_to_ptr.vmem [resolvable:$true] %s56
      %62 = dma.hbm_to_vmem [thread:$0]  %s3, 2048, %s57, [#allocation9], 128, 128, 8
    $region17: #{tpu_custom_call.1} parent=1 // pred_fallthru
      _
    // Predicated region
    $region18: #{tpu_custom_call.1} parent=1 // pred_check
      _
    $region19: #{tpu_custom_call.1} parent=1 // pred_check_branch
      %64 = sbr.rel (0) target = $region21
    $region20: #{tpu_custom_call.1} parent=1 // pred_region
      %s66 = ssub.s32 2048, 2048
      %67 = vsyncadd [#allocation9], %s66
      %s68 = sshll.u32 [#allocation10], 4
      %s69 = int_to_ptr.vmem [resolvable:$true] %s68
      %74 = dma.hbm_to_vmem [thread:$0]  %s4, 2048, %s69, [#allocation9], 128, 128, 8
    $region21: #{tpu_custom_call.1} parent=1 // pred_fallthru
      _
    // Predicated region
    $region22: #{tpu_custom_call.1} parent=1 // pred_check
      _
    $region23: #{tpu_custom_call.1} parent=1 // pred_check_branch
      %76 = sbr.rel (0) target = $region25
    $region24: #{tpu_custom_call.1} parent=1 // pred_region
      %s78 = ssub.s32 2048, 2048
      %79 = vsyncadd [#allocation12], %s78
      %s80 = sshll.u32 [#allocation11], 4
      %s81 = int_to_ptr.vmem [resolvable:$true] %s80
      %86 = dma.hbm_to_vmem [thread:$0]  %s5, 2048, %s81, [#allocation12], 128, 128, 8
    $region25: #{tpu_custom_call.1} parent=1 // pred_fallthru
      _
    // Predicated region
    $region26: #{tpu_custom_call.1} parent=1 // pred_check
      _
    $region27: #{tpu_custom_call.1} parent=1 // pred_check_branch
      %88 = sbr.rel (0) target = $region29
    $region28: #{tpu_custom_call.1} parent=1 // pred_region
      _
    $region29: #{tpu_custom_call.1} parent=1 // pred_fallthru
      _
    // Predicated region
    $region30: #{tpu_custom_call.1} parent=1 // pred_check
      _
    $region31: #{tpu_custom_call.1} parent=1 // pred_check_branch
      %90 = sbr.rel (0) target = $region33
    $region32: #{tpu_custom_call.1} parent=1 // pred_region
      %91 = dma.done [#allocation3], 128
    $region33: #{tpu_custom_call.1} parent=1 // pred_fallthru
      _
    // Predicated region
    $region34: #{tpu_custom_call.1} parent=1 // pred_check
      _
    $region35: #{tpu_custom_call.1} parent=1 // pred_check_branch
      %93 = sbr.rel (0) target = $region37
    $region36: #{tpu_custom_call.1} parent=1 // pred_region
      %94 = dma.done [#allocation6], 2048
    $region37: #{tpu_custom_call.1} parent=1 // pred_fallthru
      _
    // Predicated region
    $region38: #{tpu_custom_call.1} parent=1 // pred_check
      _
    $region39: #{tpu_custom_call.1} parent=1 // pred_check_branch
      %96 = sbr.rel (0) target = $region41
    $region40: #{tpu_custom_call.1} parent=1 // pred_region
      %97 = dma.done [#allocation6], 2048
    $region41: #{tpu_custom_call.1} parent=1 // pred_fallthru
      _
    // Predicated region
    $region42: #{tpu_custom_call.1} parent=1 // pred_check
      _
    $region43: #{tpu_custom_call.1} parent=1 // pred_check_branch
      %99 = sbr.rel (0) target = $region45
    $region44: #{tpu_custom_call.1} parent=1 // pred_region
      %100 = dma.done [#allocation9], 2048
    $region45: #{tpu_custom_call.1} parent=1 // pred_fallthru
      _
    // Predicated region
    $region46: #{tpu_custom_call.1} parent=1 // pred_check
      _
    $region47: #{tpu_custom_call.1} parent=1 // pred_check_branch
      %102 = sbr.rel (0) target = $region49
    $region48: #{tpu_custom_call.1} parent=1 // pred_region
      %103 = dma.done [#allocation9], 2048
    $region49: #{tpu_custom_call.1} parent=1 // pred_fallthru
      _
    // Predicated region
    $region50: #{tpu_custom_call.1} parent=1 // pred_check
      _
    $region51: #{tpu_custom_call.1} parent=1 // pred_check_branch
      %105 = sbr.rel (0) target = $region53
    $region52: #{tpu_custom_call.1} parent=1 // pred_region
      %106 = dma.done [#allocation12], 2048
    $region53: #{tpu_custom_call.1} parent=1 // pred_fallthru
      _
    %v107 = vld [vmem:[#allocation2] sm:$0xff]
    %v108 = vld [vmem:[#allocation5] sm:$0xff]
    %v109 = vld [vmem:[#allocation5 + $0x8] sm:$0xff]
    %v110 = vld [vmem:[#allocation5 + $0x10] sm:$0xff]
    %v111 = vld [vmem:[#allocation5 + $0x18] sm:$0xff]
    %v112 = vld [vmem:[#allocation5 + $0x20] sm:$0xff]
    %v113 = vld [vmem:[#allocation5 + $0x28] sm:$0xff]
    %v114 = vld [vmem:[#allocation5 + $0x30] sm:$0xff]
    %v115 = vld [vmem:[#allocation5 + $0x38] sm:$0xff]
    %v116 = vld [vmem:[#allocation5 + $0x40] sm:$0xff]
    %v117 = vld [vmem:[#allocation5 + $0x48] sm:$0xff]
    %v118 = vld [vmem:[#allocation5 + $0x50] sm:$0xff]
    %v119 = vld [vmem:[#allocation5 + $0x58] sm:$0xff]
    %v120 = vld [vmem:[#allocation5 + $0x60] sm:$0xff]
    %v121 = vld [vmem:[#allocation5 + $0x68] sm:$0xff]
    %v122 = vld [vmem:[#allocation5 + $0x70] sm:$0xff]
    %v123 = vld [vmem:[#allocation5 + $0x78] sm:$0xff]
    %v124 = vld [vmem:[%s6] sm:$0x1]
    %v125 = vlaneseq
    %v126 = vshrl.u32 %v125, 7
    %v127 = vsub.s32 0, %v126
    %v128 = vrot.slane %v124, %v127
    %129 = vmatprep.subr.mxu0 0.0
    %130 = vmatpush1.msra.mxu0 %v108
    %131 = vmatprep.subr.mxu0 0.0
    %132 = vmatpush1.msra.mxu0 %v109
    %133 = vmatprep.subr.mxu0 0.0
    %134 = vmatpush1.msra.mxu0 %v110
    %135 = vmatprep.subr.mxu0 0.0
    %136 = vmatpush1.msra.mxu0 %v111
    %137 = vmatprep.subr.mxu0 0.0
    %138 = vmatpush1.msra.mxu0 %v112
    %139 = vmatprep.subr.mxu0 0.0
    %140 = vmatpush1.msra.mxu0 %v113
    %141 = vmatprep.subr.mxu0 0.0
    %142 = vmatpush1.msra.mxu0 %v114
    %143 = vmatprep.subr.mxu0 0.0
    %144 = vmatpush1.msra.mxu0 %v115
    %145 = vmatprep.subr.mxu0 0.0
    %146 = vmatpush1.msra.mxu0 %v116
    %147 = vmatprep.subr.mxu0 0.0
    %148 = vmatpush1.msra.mxu0 %v117
    %149 = vmatprep.subr.mxu0 0.0
    %150 = vmatpush1.msra.mxu0 %v118
    %151 = vmatprep.subr.mxu0 0.0
    %152 = vmatpush1.msra.mxu0 %v119
    %153 = vmatprep.subr.mxu0 0.0
    %154 = vmatpush1.msra.mxu0 %v120
    %155 = vmatprep.subr.mxu0 0.0
    %156 = vmatpush1.msra.mxu0 %v121
    %157 = vmatprep.subr.mxu0 0.0
    %158 = vmatpush1.msra.mxu0 %v122
    %159 = vmatprep.subr.mxu0 0.0
    %160 = vmatpush1.msra.mxu0 %v123
    %161 = vmatprep.subr.mxu0 0.0
    %162 = vmatpush1.msra.mxu0 0.0
    %163 = vmatprep.subr.mxu0 0.0
    %164 = vmatpush1.msra.mxu0 0.0
    %165 = vmatprep.subr.mxu0 0.0
    %166 = vmatpush1.msra.mxu0 0.0
    %167 = vmatprep.subr.mxu0 0.0
    %168 = vmatpush1.msra.mxu0 0.0
    %169 = vmatprep.subr.mxu0 0.0
    %170 = vmatpush1.msra.mxu0 0.0
    %171 = vmatprep.subr.mxu0 0.0
    %172 = vmatpush1.msra.mxu0 0.0
    %173 = vmatprep.subr.mxu0 0.0
    %174 = vmatpush1.msra.mxu0 0.0
    %175 = vmatprep.subr.mxu0 0.0
    %176 = vmatpush1.msra.mxu0 0.0
    %177 = vmatprep.subr.mxu0 0.0
    %178 = vmatpush1.msra.mxu0 0.0
    %179 = vmatprep.subr.mxu0 0.0
    %180 = vmatpush1.msra.mxu0 0.0
    %181 = vmatprep.subr.mxu0 0.0
    %182 = vmatpush1.msra.mxu0 0.0
    %183 = vmatprep.subr.mxu0 0.0
    %184 = vmatpush1.msra.mxu0 0.0
    %185 = vmatprep.subr.mxu0 0.0
    %186 = vmatpush1.msra.mxu0 0.0
    %187 = vmatprep.subr.mxu0 0.0
    %188 = vmatpush1.msra.mxu0 0.0
    %189 = vmatprep.subr.mxu0 0.0
    %190 = vmatpush1.msra.mxu0 0.0
    %191 = vmatprep.subr.mxu0 0.0
    %192 = vmatpush1.msra.mxu0 0.0
    %193 = vmatprep.mubr.f32.mxu0 0.0
    %194 = vmatmul.mubr.f32.gmra.mrb[0].mxu0 %v107
    %v195 = vpop.f32.mrb[0].mxu0
    %v196 = vadd.f32 %v128, %v195
    %v197 = vpop.f32.mrb[0].mxu0
    %198 = vdwg.mxu0
    %v199 = vmul.f32 %v196, %v196
    %v200 = vmul.f32 %v199, 0.035677407
    %v201 = vadd.f32 %v200, 0.7978846
    %v202 = vmul.f32 %v196, %v201
    %v203 = vtanh.pop %v202
    %v204 = vmul.f32 %v203, 0.5
    %v205 = vadd.f32 %v204, 0.5
    %v206 = vmul.f32 %v196, %v205
    %v207 = vadd.f32 %v206, %v107
    %v208 = vld [vmem:[#allocation7] sm:$0xff]
    %v209 = vld [vmem:[#allocation7 + $0x8] sm:$0xff]
    %v210 = vld [vmem:[#allocation7 + $0x10] sm:$0xff]
    %v211 = vld [vmem:[#allocation7 + $0x18] sm:$0xff]
    %v212 = vld [vmem:[#allocation7 + $0x20] sm:$0xff]
    %v213 = vld [vmem:[#allocation7 + $0x28] sm:$0xff]
    %v214 = vld [vmem:[#allocation7 + $0x30] sm:$0xff]
    %v215 = vld [vmem:[#allocation7 + $0x38] sm:$0xff]
    %v216 = vld [vmem:[#allocation7 + $0x40] sm:$0xff]
    %v217 = vld [vmem:[#allocation7 + $0x48] sm:$0xff]
    %v218 = vld [vmem:[#allocation7 + $0x50] sm:$0xff]
    %v219 = vld [vmem:[#allocation7 + $0x58] sm:$0xff]
    %v220 = vld [vmem:[#allocation7 + $0x60] sm:$0xff]
    %v221 = vld [vmem:[#allocation7 + $0x68] sm:$0xff]
    %v222 = vld [vmem:[#allocation7 + $0x70] sm:$0xff]
    %v223 = vld [vmem:[#allocation7 + $0x78] sm:$0xff]
    %v224 = vld [vmem:[%s6 + $0x1] sm:$0x1]
    %v225 = vlaneseq
    %v226 = vshrl.u32 %v225, 7
    %v227 = vsub.s32 0, %v226
    %v228 = vrot.slane %v224, %v227
    %229 = vmatprep.subr.mxu0 0.0
    %230 = vmatpush1.msra.mxu0 %v208
    %231 = vmatprep.subr.mxu0 0.0
    %232 = vmatpush1.msra.mxu0 %v209
    %233 = vmatprep.subr.mxu0 0.0
    %234 = vmatpush1.msra.mxu0 %v210
    %235 = vmatprep.subr.mxu0 0.0
    %236 = vmatpush1.msra.mxu0 %v211
    %237 = vmatprep.subr.mxu0 0.0
    %238 = vmatpush1.msra.mxu0 %v212
    %239 = vmatprep.subr.mxu0 0.0
    %240 = vmatpush1.msra.mxu0 %v213
    %241 = vmatprep.subr.mxu0 0.0
    %242 = vmatpush1.msra.mxu0 %v214
    %243 = vmatprep.subr.mxu0 0.0
    %244 = vmatpush1.msra.mxu0 %v215
    %245 = vmatprep.subr.mxu0 0.0
    %246 = vmatpush1.msra.mxu0 %v216
    %247 = vmatprep.subr.mxu0 0.0
    %248 = vmatpush1.msra.mxu0 %v217
    %249 = vmatprep.subr.mxu0 0.0
    %250 = vmatpush1.msra.mxu0 %v218
    %251 = vmatprep.subr.mxu0 0.0
    %252 = vmatpush1.msra.mxu0 %v219
    %253 = vmatprep.subr.mxu0 0.0
    %254 = vmatpush1.msra.mxu0 %v220
    %255 = vmatprep.subr.mxu0 0.0
    %256 = vmatpush1.msra.mxu0 %v221
    %257 = vmatprep.subr.mxu0 0.0
    %258 = vmatpush1.msra.mxu0 %v222
    %259 = vmatprep.subr.mxu0 0.0
    %260 = vmatpush1.msra.mxu0 %v223
    %261 = vmatprep.subr.mxu0 0.0
    %262 = vmatpush1.msra.mxu0 0.0
    %263 = vmatprep.subr.mxu0 0.0
    %264 = vmatpush1.msra.mxu0 0.0
    %265 = vmatprep.subr.mxu0 0.0
    %266 = vmatpush1.msra.mxu0 0.0
    %267 = vmatprep.subr.mxu0 0.0
    %268 = vmatpush1.msra.mxu0 0.0
    %269 = vmatprep.subr.mxu0 0.0
    %270 = vmatpush1.msra.mxu0 0.0
    %271 = vmatprep.subr.mxu0 0.0
    %272 = vmatpush1.msra.mxu0 0.0
    %273 = vmatprep.subr.mxu0 0.0
    %274 = vmatpush1.msra.mxu0 0.0
    %275 = vmatprep.subr.mxu0 0.0
    %276 = vmatpush1.msra.mxu0 0.0
    %277 = vmatprep.subr.mxu0 0.0
    %278 = vmatpush1.msra.mxu0 0.0
    %279 = vmatprep.subr.mxu0 0.0
    %280 = vmatpush1.msra.mxu0 0.0
    %281 = vmatprep.subr.mxu0 0.0
    %282 = vmatpush1.msra.mxu0 0.0
    %283 = vmatprep.subr.mxu0 0.0
    %284 = vmatpush1.msra.mxu0 0.0
    %285 = vmatprep.subr.mxu0 0.0
    %286 = vmatpush1.msra.mxu0 0.0
    %287 = vmatprep.subr.mxu0 0.0
    %288 = vmatpush1.msra.mxu0 0.0
    %289 = vmatprep.subr.mxu0 0.0
    %290 = vmatpush1.msra.mxu0 0.0
    %291 = vmatprep.subr.mxu0 0.0
    %292 = vmatpush1.msra.mxu0 0.0
    %293 = vmatprep.mubr.f32.mxu0 0.0
    %294 = vmatmul.mubr.f32.gmra.mrb[0].mxu0 %v207
    %v295 = vpop.f32.mrb[0].mxu0
    %v296 = vadd.f32 %v228, %v295
    %v297 = vpop.f32.mrb[0].mxu0
    %298 = vdwg.mxu0
    %v299 = vmul.f32 %v296, %v296
    %v300 = vmul.f32 %v299, 0.035677407
    %v301 = vadd.f32 %v300, 0.7978846
    %v302 = vmul.f32 %v296, %v301
    %v303 = vtanh.pop %v302
    %v304 = vmul.f32 %v303, 0.5
    %v305 = vadd.f32 %v304, 0.5
    %v306 = vmul.f32 %v296, %v305
    %v307 = vadd.f32 %v306, %v207
    %v308 = vld [vmem:[#allocation8] sm:$0xff]
    %v309 = vld [vmem:[#allocation8 + $0x8] sm:$0xff]
    %v310 = vld [vmem:[#allocation8 + $0x10] sm:$0xff]
    %v311 = vld [vmem:[#allocation8 + $0x18] sm:$0xff]
    %v312 = vld [vmem:[#allocation8 + $0x20] sm:$0xff]
    %v313 = vld [vmem:[#allocation8 + $0x28] sm:$0xff]
    %v314 = vld [vmem:[#allocation8 + $0x30] sm:$0xff]
    %v315 = vld [vmem:[#allocation8 + $0x38] sm:$0xff]
    %v316 = vld [vmem:[#allocation8 + $0x40] sm:$0xff]
    %v317 = vld [vmem:[#allocation8 + $0x48] sm:$0xff]
    %v318 = vld [vmem:[#allocation8 + $0x50] sm:$0xff]
    %v319 = vld [vmem:[#allocation8 + $0x58] sm:$0xff]
    %v320 = vld [vmem:[#allocation8 + $0x60] sm:$0xff]
    %v321 = vld [vmem:[#allocation8 + $0x68] sm:$0xff]
    %v322 = vld [vmem:[#allocation8 + $0x70] sm:$0xff]
    %v323 = vld [vmem:[#allocation8 + $0x78] sm:$0xff]
    %v324 = vld [vmem:[%s6 + $0x2] sm:$0x1]
    %v325 = vlaneseq
    %v326 = vshrl.u32 %v325, 7
    %v327 = vsub.s32 0, %v326
    %v328 = vrot.slane %v324, %v327
    %329 = vmatprep.subr.mxu0 0.0
    %330 = vmatpush1.msra.mxu0 %v308
    %331 = vmatprep.subr.mxu0 0.0
    %332 = vmatpush1.msra.mxu0 %v309
    %333 = vmatprep.subr.mxu0 0.0
    %334 = vmatpush1.msra.mxu0 %v310
    %335 = vmatprep.subr.mxu0 0.0
    %336 = vmatpush1.msra.mxu0 %v311
    %337 = vmatprep.subr.mxu0 0.0
    %338 = vmatpush1.msra.mxu0 %v312
    %339 = vmatprep.subr.mxu0 0.0
    %340 = vmatpush1.msra.mxu0 %v313
    %341 = vmatprep.subr.mxu0 0.0
    %342 = vmatpush1.msra.mxu0 %v314
    %343 = vmatprep.subr.mxu0 0.0
    %344 = vmatpush1.msra.mxu0 %v315
    %345 = vmatprep.subr.mxu0 0.0
    %346 = vmatpush1.msra.mxu0 %v316
    %347 = vmatprep.subr.mxu0 0.0
    %348 = vmatpush1.msra.mxu0 %v317
    %349 = vmatprep.subr.mxu0 0.0
    %350 = vmatpush1.msra.mxu0 %v318
    %351 = vmatprep.subr.mxu0 0.0
    %352 = vmatpush1.msra.mxu0 %v319
    %353 = vmatprep.subr.mxu0 0.0
    %354 = vmatpush1.msra.mxu0 %v320
    %355 = vmatprep.subr.mxu0 0.0
    %356 = vmatpush1.msra.mxu0 %v321
    %357 = vmatprep.subr.mxu0 0.0
    %358 = vmatpush1.msra.mxu0 %v322
    %359 = vmatprep.subr.mxu0 0.0
    %360 = vmatpush1.msra.mxu0 %v323
    %361 = vmatprep.subr.mxu0 0.0
    %362 = vmatpush1.msra.mxu0 0.0
    %363 = vmatprep.subr.mxu0 0.0
    %364 = vmatpush1.msra.mxu0 0.0
    %365 = vmatprep.subr.mxu0 0.0
    %366 = vmatpush1.msra.mxu0 0.0
    %367 = vmatprep.subr.mxu0 0.0
    %368 = vmatpush1.msra.mxu0 0.0
    %369 = vmatprep.subr.mxu0 0.0
    %370 = vmatpush1.msra.mxu0 0.0
    %371 = vmatprep.subr.mxu0 0.0
    %372 = vmatpush1.msra.mxu0 0.0
    %373 = vmatprep.subr.mxu0 0.0
    %374 = vmatpush1.msra.mxu0 0.0
    %375 = vmatprep.subr.mxu0 0.0
    %376 = vmatpush1.msra.mxu0 0.0
    %377 = vmatprep.subr.mxu0 0.0
    %378 = vmatpush1.msra.mxu0 0.0
    %379 = vmatprep.subr.mxu0 0.0
    %380 = vmatpush1.msra.mxu0 0.0
    %381 = vmatprep.subr.mxu0 0.0
    %382 = vmatpush1.msra.mxu0 0.0
    %383 = vmatprep.subr.mxu0 0.0
    %384 = vmatpush1.msra.mxu0 0.0
    %385 = vmatprep.subr.mxu0 0.0
    %386 = vmatpush1.msra.mxu0 0.0
    %387 = vmatprep.subr.mxu0 0.0
    %388 = vmatpush1.msra.mxu0 0.0
    %389 = vmatprep.subr.mxu0 0.0
    %390 = vmatpush1.msra.mxu0 0.0
    %391 = vmatprep.subr.mxu0 0.0
    %392 = vmatpush1.msra.mxu0 0.0
    %393 = vmatprep.mubr.f32.mxu0 0.0
    %394 = vmatmul.mubr.f32.gmra.mrb[0].mxu0 %v307
    %v395 = vpop.f32.mrb[0].mxu0
    %v396 = vadd.f32 %v328, %v395
    %v397 = vpop.f32.mrb[0].mxu0
    %398 = vdwg.mxu0
    %v399 = vmul.f32 %v396, %v396
    %v400 = vmul.f32 %v399, 0.035677407
    %v401 = vadd.f32 %v400, 0.7978846
    %v402 = vmul.f32 %v396, %v401
    %v403 = vtanh.pop %v402
    %v404 = vmul.f32 %v403, 0.5
    %v405 = vadd.f32 %v404, 0.5
    %v406 = vmul.f32 %v396, %v405
    %v407 = vadd.f32 %v406, %v307
    %v408 = vld [vmem:[#allocation10] sm:$0xff]
    %v409 = vld [vmem:[#allocation10 + $0x8] sm:$0xff]
    %v410 = vld [vmem:[#allocation10 + $0x10] sm:$0xff]
    %v411 = vld [vmem:[#allocation10 + $0x18] sm:$0xff]
    %v412 = vld [vmem:[#allocation10 + $0x20] sm:$0xff]
    %v413 = vld [vmem:[#allocation10 + $0x28] sm:$0xff]
    %v414 = vld [vmem:[#allocation10 + $0x30] sm:$0xff]
    %v415 = vld [vmem:[#allocation10 + $0x38] sm:$0xff]
    %v416 = vld [vmem:[#allocation10 + $0x40] sm:$0xff]
    %v417 = vld [vmem:[#allocation10 + $0x48] sm:$0xff]
    %v418 = vld [vmem:[#allocation10 + $0x50] sm:$0xff]
    %v419 = vld [vmem:[#allocation10 + $0x58] sm:$0xff]
    %v420 = vld [vmem:[#allocation10 + $0x60] sm:$0xff]
    %v421 = vld [vmem:[#allocation10 + $0x68] sm:$0xff]
    %v422 = vld [vmem:[#allocation10 + $0x70] sm:$0xff]
    %v423 = vld [vmem:[#allocation10 + $0x78] sm:$0xff]
    %v424 = vld [vmem:[%s6 + $0x3] sm:$0x1]
    %v425 = vlaneseq
    %v426 = vshrl.u32 %v425, 7
    %v427 = vsub.s32 0, %v426
    %v428 = vrot.slane %v424, %v427
    %429 = vmatprep.subr.mxu0 0.0
    %430 = vmatpush1.msra.mxu0 %v408
    %431 = vmatprep.subr.mxu0 0.0
    %432 = vmatpush1.msra.mxu0 %v409
    %433 = vmatprep.subr.mxu0 0.0
    %434 = vmatpush1.msra.mxu0 %v410
    %435 = vmatprep.subr.mxu0 0.0
    %436 = vmatpush1.msra.mxu0 %v411
    %437 = vmatprep.subr.mxu0 0.0
    %438 = vmatpush1.msra.mxu0 %v412
    %439 = vmatprep.subr.mxu0 0.0
    %440 = vmatpush1.msra.mxu0 %v413
    %441 = vmatprep.subr.mxu0 0.0
    %442 = vmatpush1.msra.mxu0 %v414
    %443 = vmatprep.subr.mxu0 0.0
    %444 = vmatpush1.msra.mxu0 %v415
    %445 = vmatprep.subr.mxu0 0.0
    %446 = vmatpush1.msra.mxu0 %v416
    %447 = vmatprep.subr.mxu0 0.0
    %448 = vmatpush1.msra.mxu0 %v417
    %449 = vmatprep.subr.mxu0 0.0
    %450 = vmatpush1.msra.mxu0 %v418
    %451 = vmatprep.subr.mxu0 0.0
    %452 = vmatpush1.msra.mxu0 %v419
    %453 = vmatprep.subr.mxu0 0.0
    %454 = vmatpush1.msra.mxu0 %v420
    %455 = vmatprep.subr.mxu0 0.0
    %456 = vmatpush1.msra.mxu0 %v421
    %457 = vmatprep.subr.mxu0 0.0
    %458 = vmatpush1.msra.mxu0 %v422
    %459 = vmatprep.subr.mxu0 0.0
    %460 = vmatpush1.msra.mxu0 %v423
    %461 = vmatprep.subr.mxu0 0.0
    %462 = vmatpush1.msra.mxu0 0.0
    %463 = vmatprep.subr.mxu0 0.0
    %464 = vmatpush1.msra.mxu0 0.0
    %465 = vmatprep.subr.mxu0 0.0
    %466 = vmatpush1.msra.mxu0 0.0
    %467 = vmatprep.subr.mxu0 0.0
    %468 = vmatpush1.msra.mxu0 0.0
    %469 = vmatprep.subr.mxu0 0.0
    %470 = vmatpush1.msra.mxu0 0.0
    %471 = vmatprep.subr.mxu0 0.0
    %472 = vmatpush1.msra.mxu0 0.0
    %473 = vmatprep.subr.mxu0 0.0
    %474 = vmatpush1.msra.mxu0 0.0
    %475 = vmatprep.subr.mxu0 0.0
    %476 = vmatpush1.msra.mxu0 0.0
    %477 = vmatprep.subr.mxu0 0.0
    %478 = vmatpush1.msra.mxu0 0.0
    %479 = vmatprep.subr.mxu0 0.0
    %480 = vmatpush1.msra.mxu0 0.0
    %481 = vmatprep.subr.mxu0 0.0
    %482 = vmatpush1.msra.mxu0 0.0
    %483 = vmatprep.subr.mxu0 0.0
    %484 = vmatpush1.msra.mxu0 0.0
    %485 = vmatprep.subr.mxu0 0.0
    %486 = vmatpush1.msra.mxu0 0.0
    %487 = vmatprep.subr.mxu0 0.0
    %488 = vmatpush1.msra.mxu0 0.0
    %489 = vmatprep.subr.mxu0 0.0
    %490 = vmatpush1.msra.mxu0 0.0
    %491 = vmatprep.subr.mxu0 0.0
    %492 = vmatpush1.msra.mxu0 0.0
    %493 = vmatprep.mubr.f32.mxu0 0.0
    %494 = vmatmul.mubr.f32.gmra.mrb[0].mxu0 %v407
    %v495 = vpop.f32.mrb[0].mxu0
    %v496 = vadd.f32 %v428, %v495
    %v497 = vpop.f32.mrb[0].mxu0
    %498 = vdwg.mxu0
    %v499 = vmul.f32 %v496, %v496
    %v500 = vmul.f32 %v499, 0.035677407
    %v501 = vadd.f32 %v500, 0.7978846
    %v502 = vmul.f32 %v496, %v501
    %v503 = vtanh.pop %v502
    %v504 = vmul.f32 %v503, 0.5
    %v505 = vadd.f32 %v504, 0.5
    %v506 = vmul.f32 %v496, %v505
    %v507 = vadd.f32 %v506, %v407
    %v508 = vld [vmem:[#allocation11] sm:$0xff]
    %v509 = vld [vmem:[#allocation11 + $0x8] sm:$0xff]
    %v510 = vld [vmem:[#allocation11 + $0x10] sm:$0xff]
    %v511 = vld [vmem:[#allocation11 + $0x18] sm:$0xff]
    %v512 = vld [vmem:[#allocation11 + $0x20] sm:$0xff]
    %v513 = vld [vmem:[#allocation11 + $0x28] sm:$0xff]
    %v514 = vld [vmem:[#allocation11 + $0x30] sm:$0xff]
    %v515 = vld [vmem:[#allocation11 + $0x38] sm:$0xff]
    %v516 = vld [vmem:[#allocation11 + $0x40] sm:$0xff]
    %v517 = vld [vmem:[#allocation11 + $0x48] sm:$0xff]
    %v518 = vld [vmem:[#allocation11 + $0x50] sm:$0xff]
    %v519 = vld [vmem:[#allocation11 + $0x58] sm:$0xff]
    %v520 = vld [vmem:[#allocation11 + $0x60] sm:$0xff]
    %v521 = vld [vmem:[#allocation11 + $0x68] sm:$0xff]
    %v522 = vld [vmem:[#allocation11 + $0x70] sm:$0xff]
    %v523 = vld [vmem:[#allocation11 + $0x78] sm:$0xff]
    %v524 = vld [vmem:[%s6 + $0x4] sm:$0x1]
    %v525 = vlaneseq
    %v526 = vshrl.u32 %v525, 7
    %v527 = vsub.s32 0, %v526
    %v528 = vrot.slane %v524, %v527
    %529 = vmatprep.subr.mxu0 0.0
    %530 = vmatpush1.msra.mxu0 %v508
    %531 = vmatprep.subr.mxu0 0.0
    %532 = vmatpush1.msra.mxu0 %v509
    %533 = vmatprep.subr.mxu0 0.0
    %534 = vmatpush1.msra.mxu0 %v510
    %535 = vmatprep.subr.mxu0 0.0
    %536 = vmatpush1.msra.mxu0 %v511
    %537 = vmatprep.subr.mxu0 0.0
    %538 = vmatpush1.msra.mxu0 %v512
    %539 = vmatprep.subr.mxu0 0.0
    %540 = vmatpush1.msra.mxu0 %v513
    %541 = vmatprep.subr.mxu0 0.0
    %542 = vmatpush1.msra.mxu0 %v514
    %543 = vmatprep.subr.mxu0 0.0
    %544 = vmatpush1.msra.mxu0 %v515
    %545 = vmatprep.subr.mxu0 0.0
    %546 = vmatpush1.msra.mxu0 %v516
    %547 = vmatprep.subr.mxu0 0.0
    %548 = vmatpush1.msra.mxu0 %v517
    %549 = vmatprep.subr.mxu0 0.0
    %550 = vmatpush1.msra.mxu0 %v518
    %551 = vmatprep.subr.mxu0 0.0
    %552 = vmatpush1.msra.mxu0 %v519
    %553 = vmatprep.subr.mxu0 0.0
    %554 = vmatpush1.msra.mxu0 %v520
    %555 = vmatprep.subr.mxu0 0.0
    %556 = vmatpush1.msra.mxu0 %v521
    %557 = vmatprep.subr.mxu0 0.0
    %558 = vmatpush1.msra.mxu0 %v522
    %559 = vmatprep.subr.mxu0 0.0
    %560 = vmatpush1.msra.mxu0 %v523
    %561 = vmatprep.subr.mxu0 0.0
    %562 = vmatpush1.msra.mxu0 0.0
    %563 = vmatprep.subr.mxu0 0.0
    %564 = vmatpush1.msra.mxu0 0.0
    %565 = vmatprep.subr.mxu0 0.0
    %566 = vmatpush1.msra.mxu0 0.0
    %567 = vmatprep.subr.mxu0 0.0
    %568 = vmatpush1.msra.mxu0 0.0
    %569 = vmatprep.subr.mxu0 0.0
    %570 = vmatpush1.msra.mxu0 0.0
    %571 = vmatprep.subr.mxu0 0.0
    %572 = vmatpush1.msra.mxu0 0.0
    %573 = vmatprep.subr.mxu0 0.0
    %574 = vmatpush1.msra.mxu0 0.0
    %575 = vmatprep.subr.mxu0 0.0
    %576 = vmatpush1.msra.mxu0 0.0
    %577 = vmatprep.subr.mxu0 0.0
    %578 = vmatpush1.msra.mxu0 0.0
    %579 = vmatprep.subr.mxu0 0.0
    %580 = vmatpush1.msra.mxu0 0.0
    %581 = vmatprep.subr.mxu0 0.0
    %582 = vmatpush1.msra.mxu0 0.0
    %583 = vmatprep.subr.mxu0 0.0
    %584 = vmatpush1.msra.mxu0 0.0
    %585 = vmatprep.subr.mxu0 0.0
    %586 = vmatpush1.msra.mxu0 0.0
    %587 = vmatprep.subr.mxu0 0.0
    %588 = vmatpush1.msra.mxu0 0.0
    %589 = vmatprep.subr.mxu0 0.0
    %590 = vmatpush1.msra.mxu0 0.0
    %591 = vmatprep.subr.mxu0 0.0
    %592 = vmatpush1.msra.mxu0 0.0
    %593 = vmatprep.mubr.f32.mxu0 0.0
    %594 = vmatmul.mubr.f32.gmra.mrb[0].mxu0 %v507
    %v595 = vpop.f32.mrb[0].mxu0
    %v596 = vadd.f32 %v528, %v595
    %v597 = vpop.f32.mrb[0].mxu0
    %598 = vdwg.mxu0
    %v599 = vmul.f32 %v596, %v596
    %v600 = vmul.f32 %v599, 0.035677407
    %v601 = vadd.f32 %v600, 0.7978846
    %v602 = vmul.f32 %v596, %v601
    %v603 = vtanh.pop %v602
    %v604 = vmul.f32 %v603, 0.5
    %v605 = vadd.f32 %v604, 0.5
    %v606 = vmul.f32 %v596, %v605
    %v607 = vadd.f32 %v606, %v507
    %608 = vst [vmem:[#allocation13] sm:$0xff] %v607
    // Predicated region
    $region54: #{tpu_custom_call.1} parent=1 // pred_check
      _
    $region55: #{tpu_custom_call.1} parent=1 // pred_check_branch
      %610 = sbr.rel (0) target = $region57
    $region56: #{tpu_custom_call.1} parent=1 // pred_region
      %s612 = ssub.s32 128, 128
      %613 = vsyncadd [#allocation4], %s612
      %s615 = sshll.u32 [#allocation13], 4
      %s616 = int_to_ptr.vmem [resolvable:$true] %s615
      %618 = dma.vmem_to_hbm [thread:$0]  %s616, 128, %s7, [#allocation4]
    $region57: #{tpu_custom_call.1} parent=1 // pred_fallthru
      _
    // Predicated region
    $region58: #{tpu_custom_call.1} parent=1 // pred_check
      _
    $region59: #{tpu_custom_call.1} parent=1 // pred_check_branch
      %620 = sbr.rel (0) target = $region61
    $region60: #{tpu_custom_call.1} parent=1 // pred_region
      %621 = dma.done [#allocation4], 128
    $region61: #{tpu_custom_call.1} parent=1 // pred_fallthru
      _
    %622 = vsyncpa [#allocation3], 1
    %623 = vsyncpa [#allocation6], 1
    %624 = vsyncpa [#allocation9], 1
    %625 = vsyncpa [#allocation12], 1
    %626 = vsyncpa [#allocation4], 1

</llo_original>
